<compile_context>
chip_gen: v6e
topology: v6e:2x2x1
jax: 0.10.0
libtpu: 0.0.40
codegen_flags: <defaults>
</compile_context>

<pallas_src>
import functools

import jax
import jax.numpy as jnp
from jax.experimental import pallas as pl
from jax.experimental.pallas import tpu as pltpu


def _make_conv_relu_kernel(*, k, d, frame_w, t_out, c_in):
    """Fused conv(+bias)+ReLU kernel body for one batch element."""

    def kernel(x_ref, w_ref, b_ref, m_ref, o_ref, a_ref):
        # x_ref: (C_in, Lxp)  flattened, spatially padded input frame
        # w_ref: (C_out, K)   conv weight, K ordered (ky, kx, c)
        # b_ref: (C_out, 1)   f32 bias
        # m_ref: (k, T)       per-kx column-validity masks (0/1)
        # o_ref: (C_out, T)   compact output tile (lane-dense stores)
        # a_ref: (K, T)       VMEM scratch: assembled im2col block
        m = m_ref[...]
        for ky in range(k):
            for kx in range(k):
                t_idx = ky * k + kx
                off = (ky * frame_w + kx) * d          # static lane offset
                tap = x_ref[:, pl.ds(off, t_out)]      # (C_in, T) shifted view
                # Zero out lanes whose source column wrapped across a row edge.
                a_ref[pl.ds(t_idx * c_in, c_in), :] = tap * m[kx:kx + 1, :]
        acc = jnp.dot(w_ref[...], a_ref[...],
                      preferred_element_type=jnp.float32)   # (C_out, T) on MXU
        acc = acc + b_ref[...]                               # bias in f32
        o_ref[...] = jnp.maximum(acc, 0.0).astype(o_ref.dtype)

    return kernel


@functools.partial(jax.jit,
                   static_argnames=("k", "s", "d", "compute_dtype", "out_dtype"))
def first_block_forward(x, weight, bias, *, k, s=1, d=1,
                        compute_dtype=jnp.bfloat16, out_dtype=jnp.float32):
    """FirstBlock.forward: relu(conv2d(x, w, b, stride=s, pad=k//2*d, dilation=d)).

    x:      (N, C_in, H, W)      float32, NCHW
    weight: (C_out, C_in, k, k)  float32
    bias:   (C_out,)             float32
    returns (N, C_out, H_out, W_out) in `out_dtype`
    """
    N, C_in, H, W = x.shape
    C_out = weight.shape[0]
    p = k // 2 * d
    span = d * (k - 1)

    # Stride-1 output extents (stride>1 handled by subsampling at the end).
    H1 = H + 2 * p - span
    W1 = W + 2 * p - span
    assert H1 >= 1 and W1 >= 1, "kernel window does not fit the padded input"
    Wf = max(W, W1)          # frame row stride; == W1, so the output is compact
    Hf = H + 2 * p
    T = H1 * W1              # per-image output lanes
    K = C_in * k * k

    # ---- XLA-side prep: ONE cheap pad/reshape pass over x (kernel reads it once)
    xp = jnp.pad(x.astype(compute_dtype),
                 ((0, 0), (0, 0), (p, p), (0, Wf - W)))
    xf = xp.reshape(N, C_in, Hf * Wf)
    Lx = p + Hf * Wf + span                       # front/back slack for tap slices
    Lxp = ((Lx + 127) // 128) * 128               # round lanes up (free slack)
    xf = jnp.pad(xf, ((0, 0), (0, 0), (p, Lxp - p - Hf * Wf)))

    # Weight reordered so K is (ky, kx, c)-major, matching the in-kernel A rows.
    w_mat = weight.transpose(0, 2, 3, 1).reshape(C_out, K).astype(compute_dtype)
    b_mat = bias.reshape(C_out, 1).astype(jnp.float32)

    # Per-kx masks: zero the lanes whose source column falls outside [0, W).
    ox = jnp.arange(T, dtype=jnp.int32) % Wf
    masks = jnp.stack(
        [((ox + kx * d - p >= 0) & (ox + kx * d - p < W)).astype(compute_dtype)
         for kx in range(k)], axis=0)             # (k, T)

    kernel = _make_conv_relu_kernel(k=k, d=d, frame_w=Wf, t_out=T, c_in=C_in)

    c_item = jnp.dtype(compute_dtype).itemsize
    o_item = jnp.dtype(out_dtype).itemsize
    cost = pl.CostEstimate(
        flops=2 * N * T * K * C_out,
        transcendentals=0,
        bytes_accessed=(N * C_in * Lxp * c_item          # x read once
                        + C_out * K * c_item             # weight
                        + C_out * 4                      # bias
                        + k * T * c_item                 # masks
                        + N * C_out * T * o_item))       # output written once

    out = pl.pallas_call(
        kernel,
        out_shape=jax.ShapeDtypeStruct((N, C_out, T), out_dtype),
        grid=(N,),
        in_specs=[
            # Whole padded frame per batch element (read once, x stream not k^2-inflated).
            pl.BlockSpec((None, C_in, Lxp), lambda n: (n, 0, 0)),
            # Weight / bias / masks: resident blocks (constant index maps).
            pl.BlockSpec((C_out, K), lambda n: (0, 0)),
            pl.BlockSpec((C_out, 1), lambda n: (0, 0)),
            pl.BlockSpec((k, T), lambda n: (0, 0)),
        ],
        out_specs=pl.BlockSpec((None, C_out, T), lambda n: (n, 0, 0)),
        scratch_shapes=[pltpu.VMEM((K, T), compute_dtype)],
        compiler_params=pltpu.CompilerParams(
            dimension_semantics=("parallel",)),
        cost_estimate=cost,
    )(xf, w_mat, b_mat, masks)

    # Compact layout -> NCHW is a pure reshape (no extra HBM pass).
    y = out.reshape(N, C_out, H1, W1)
    if s > 1:
        # TODO(synk): stride-1 compute + subsample; a strided kernel would skip ~s^2 work.
        y = y[:, :, ::s, ::s]
    return y


def _reference(x, weight, bias, *, k, s=1, d=1):
    p = k // 2 * d
    y = jax.lax.conv_general_dilated(
        x, weight,
        window_strides=(s, s),
        padding=((p, p), (p, p)),
        rhs_dilation=(d, d),
        dimension_numbers=("NCHW", "OIHW", "NCHW"),
    )
    y = y + bias.reshape(1, -1, 1, 1)
    return jnp.maximum(y, 0.0)


if __name__ == "__main__":
    # FirstBlock(i=4, o=8, k=3, s=1, d=1)
    N, C_in, H, W = 2, 4, 16, 16
    C_out, k, s, d = 8, 3, 1, 1

    key = jax.random.PRNGKey(0)
    key_x, key_w, key_b = jax.random.split(key, 3)

    x = jax.random.normal(key_x, (N, C_in, H, W), dtype=jnp.float32)
    fan_in = C_in * k * k
    weight = jax.random.normal(key_w, (C_out, C_in, k, k), dtype=jnp.float32) / jnp.sqrt(fan_in)
    bias = jax.random.normal(key_b, (C_out,), dtype=jnp.float32) * 0.1

    y_ref = _reference(x, weight, bias, k=k, s=s, d=d)

    # Exactness check of the fused pipeline in f32.
    y_f32 = first_block_forward(x, weight, bias, k=k, s=s, d=d,
                                compute_dtype=jnp.float32)
    y_f32 = jax.block_until_ready(y_f32)
    assert y_f32.shape == (N, C_out, H, W), y_f32.shape
    assert jnp.allclose(y_f32, y_ref, atol=1e-4, rtol=1e-4), \
        float(jnp.max(jnp.abs(y_f32 - y_ref)))

    # Performance path: bf16 GEMM inputs, f32 accumulation / bias / ReLU.
    y_bf16 = first_block_forward(x, weight, bias, k=k, s=s, d=d,
                                 compute_dtype=jnp.bfloat16)
    y_bf16 = jax.block_until_ready(y_bf16)
    assert y_bf16.shape == (N, C_out, H, W), y_bf16.shape
    assert jnp.allclose(y_bf16, y_ref, atol=5e-2, rtol=5e-2), \
        float(jnp.max(jnp.abs(y_bf16 - y_ref)))

    # bf16 output option (halves the dominant output HBM stream).
    y_bf16o = first_block_forward(x, weight, bias, k=k, s=s, d=d,
                                  compute_dtype=jnp.bfloat16,
                                  out_dtype=jnp.bfloat16)
    y_bf16o = jax.block_until_ready(y_bf16o)
    assert y_bf16o.dtype == jnp.bfloat16
    assert jnp.allclose(y_bf16o.astype(jnp.float32), y_ref, atol=1e-1, rtol=1e-1), \
        float(jnp.max(jnp.abs(y_bf16o.astype(jnp.float32) - y_ref)))

    print("KERNEL_OK")
</pallas_src>

<mosaic_0001>
module attributes {stable_mosaic.version = 11 : i64} {
  func.func @kernel(%arg0: i32, %arg1: memref<1x4x384xf32, #tpu.memory_space<vmem>>, %arg2: memref<8x36xf32, #tpu.memory_space<vmem>>, %arg3: memref<8x1xf32, #tpu.memory_space<vmem>>, %arg4: memref<3x256xf32, #tpu.memory_space<vmem>>, %arg5: memref<1x8x256xf32, #tpu.memory_space<vmem>>, %arg6: memref<36x256xf32, #tpu.memory_space<vmem>>) attributes {dimension_semantics = [#tpu.dimension_semantics<parallel>], iteration_bounds = array<i64: 2>, scalar_prefetch = 0 : i64, scratch_operands = 1 : i64, tpu.core_type = #tpu.core_type<tc>, window_params = [{transform_indices = @transform_0, window_bounds = array<i64: 1, 4, 384>}, {pipeline_mode = #tpu.pipeline_mode<synchronous>, transform_indices = @transform_1, window_bounds = array<i64: 8, 36>}, {pipeline_mode = #tpu.pipeline_mode<synchronous>, transform_indices = @transform_2, window_bounds = array<i64: 8, 1>}, {pipeline_mode = #tpu.pipeline_mode<synchronous>, transform_indices = @transform_3, window_bounds = array<i64: 3, 256>}, {transform_indices = @transform_4, window_bounds = array<i64: 1, 8, 256>}]} {
    %c0 = arith.constant 0 : index
    %c0_0 = arith.constant 0 : index
    %0 = vector.load %arg4[%c0, %c0_0] : memref<3x256xf32, #tpu.memory_space<vmem>>, vector<3x256xf32>
    %c0_1 = arith.constant 0 : index
    %c0_2 = arith.constant 0 : index
    %c0_3 = arith.constant 0 : index
    %1 = vector.load %arg1[%c0_1, %c0_2, %c0_3] : memref<1x4x384xf32, #tpu.memory_space<vmem>>, vector<1x4x256xf32>
    %2 = vector.shape_cast %1 : vector<1x4x256xf32> to vector<4x256xf32>
    %3 = vector.extract_strided_slice %0 {offsets = [0, 0], sizes = [1, 256], strides = [1, 1]} : vector<3x256xf32> to vector<1x256xf32>
    %4 = vector.broadcast %3 : vector<1x256xf32> to vector<4x256xf32>
    %5 = arith.mulf %2, %4 : vector<4x256xf32>
    %c0_4 = arith.constant 0 : index
    %c0_5 = arith.constant 0 : index
    %6 = vector.load %arg6[%c0_4, %c0_5] : memref<36x256xf32, #tpu.memory_space<vmem>>, vector<4x256xf32>
    tpu.vector_store %arg6[%c0_4, %c0_5], %5 {strides = array<i32>} : memref<36x256xf32, #tpu.memory_space<vmem>>, vector<4x256xf32>,
    %c0_6 = arith.constant 0 : index
    %c0_7 = arith.constant 0 : index
    %c1 = arith.constant 1 : index
    %7 = vector.load %arg1[%c0_6, %c0_7, %c1] : memref<1x4x384xf32, #tpu.memory_space<vmem>>, vector<1x4x256xf32>
    %8 = vector.shape_cast %7 : vector<1x4x256xf32> to vector<4x256xf32>
    %9 = vector.extract_strided_slice %0 {offsets = [1, 0], sizes = [1, 256], strides = [1, 1]} : vector<3x256xf32> to vector<1x256xf32>
    %10 = vector.broadcast %9 : vector<1x256xf32> to vector<4x256xf32>
    %11 = arith.mulf %8, %10 : vector<4x256xf32>
    %c4 = arith.constant 4 : index
    %c0_8 = arith.constant 0 : index
    %12 = vector.load %arg6[%c4, %c0_8] : memref<36x256xf32, #tpu.memory_space<vmem>>, vector<4x256xf32>
    tpu.vector_store %arg6[%c4, %c0_8], %11 {strides = array<i32>} : memref<36x256xf32, #tpu.memory_space<vmem>>, vector<4x256xf32>,
    %c0_9 = arith.constant 0 : index
    %c0_10 = arith.constant 0 : index
    %c2 = arith.constant 2 : index
    %13 = vector.load %arg1[%c0_9, %c0_10, %c2] : memref<1x4x384xf32, #tpu.memory_space<vmem>>, vector<1x4x256xf32>
    %14 = vector.shape_cast %13 : vector<1x4x256xf32> to vector<4x256xf32>
    %15 = vector.extract_strided_slice %0 {offsets = [2, 0], sizes = [1, 256], strides = [1, 1]} : vector<3x256xf32> to vector<1x256xf32>
    %16 = vector.broadcast %15 : vector<1x256xf32> to vector<4x256xf32>
    %17 = arith.mulf %14, %16 : vector<4x256xf32>
    %c8 = arith.constant 8 : index
    %c0_11 = arith.constant 0 : index
    %18 = vector.load %arg6[%c8, %c0_11] : memref<36x256xf32, #tpu.memory_space<vmem>>, vector<4x256xf32>
    tpu.vector_store %arg6[%c8, %c0_11], %17 {strides = array<i32>} : memref<36x256xf32, #tpu.memory_space<vmem>>, vector<4x256xf32>,
    %c0_12 = arith.constant 0 : index
    %c0_13 = arith.constant 0 : index
    %c16 = arith.constant 16 : index
    %19 = vector.load %arg1[%c0_12, %c0_13, %c16] : memref<1x4x384xf32, #tpu.memory_space<vmem>>, vector<1x4x256xf32>
    %20 = vector.shape_cast %19 : vector<1x4x256xf32> to vector<4x256xf32>
    %21 = vector.extract_strided_slice %0 {offsets = [0, 0], sizes = [1, 256], strides = [1, 1]} : vector<3x256xf32> to vector<1x256xf32>
    %22 = vector.broadcast %21 : vector<1x256xf32> to vector<4x256xf32>
    %23 = arith.mulf %20, %22 : vector<4x256xf32>
    %c12 = arith.constant 12 : index
    %c0_14 = arith.constant 0 : index
    %24 = vector.load %arg6[%c12, %c0_14] : memref<36x256xf32, #tpu.memory_space<vmem>>, vector<4x256xf32>
    tpu.vector_store %arg6[%c12, %c0_14], %23 {strides = array<i32>} : memref<36x256xf32, #tpu.memory_space<vmem>>, vector<4x256xf32>,
    %c0_15 = arith.constant 0 : index
    %c0_16 = arith.constant 0 : index
    %c17 = arith.constant 17 : index
    %25 = vector.load %arg1[%c0_15, %c0_16, %c17] : memref<1x4x384xf32, #tpu.memory_space<vmem>>, vector<1x4x256xf32>
    %26 = vector.shape_cast %25 : vector<1x4x256xf32> to vector<4x256xf32>
    %27 = vector.extract_strided_slice %0 {offsets = [1, 0], sizes = [1, 256], strides = [1, 1]} : vector<3x256xf32> to vector<1x256xf32>
    %28 = vector.broadcast %27 : vector<1x256xf32> to vector<4x256xf32>
    %29 = arith.mulf %26, %28 : vector<4x256xf32>
    %c16_17 = arith.constant 16 : index
    %c0_18 = arith.constant 0 : index
    %30 = vector.load %arg6[%c16_17, %c0_18] : memref<36x256xf32, #tpu.memory_space<vmem>>, vector<4x256xf32>
    tpu.vector_store %arg6[%c16_17, %c0_18], %29 {strides = array<i32>} : memref<36x256xf32, #tpu.memory_space<vmem>>, vector<4x256xf32>,
    %c0_19 = arith.constant 0 : index
    %c0_20 = arith.constant 0 : index
    %c18 = arith.constant 18 : index
    %31 = vector.load %arg1[%c0_19, %c0_20, %c18] : memref<1x4x384xf32, #tpu.memory_space<vmem>>, vector<1x4x256xf32>
    %32 = vector.shape_cast %31 : vector<1x4x256xf32> to vector<4x256xf32>
    %33 = vector.extract_strided_slice %0 {offsets = [2, 0], sizes = [1, 256], strides = [1, 1]} : vector<3x256xf32> to vector<1x256xf32>
    %34 = vector.broadcast %33 : vector<1x256xf32> to vector<4x256xf32>
    %35 = arith.mulf %32, %34 : vector<4x256xf32>
    %c20 = arith.constant 20 : index
    %c0_21 = arith.constant 0 : index
    %36 = vector.load %arg6[%c20, %c0_21] : memref<36x256xf32, #tpu.memory_space<vmem>>, vector<4x256xf32>
    tpu.vector_store %arg6[%c20, %c0_21], %35 {strides = array<i32>} : memref<36x256xf32, #tpu.memory_space<vmem>>, vector<4x256xf32>,
    %c0_22 = arith.constant 0 : index
    %c0_23 = arith.constant 0 : index
    %c32 = arith.constant 32 : index
    %37 = vector.load %arg1[%c0_22, %c0_23, %c32] : memref<1x4x384xf32, #tpu.memory_space<vmem>>, vector<1x4x256xf32>
    %38 = vector.shape_cast %37 : vector<1x4x256xf32> to vector<4x256xf32>
    %39 = vector.extract_strided_slice %0 {offsets = [0, 0], sizes = [1, 256], strides = [1, 1]} : vector<3x256xf32> to vector<1x256xf32>
    %40 = vector.broadcast %39 : vector<1x256xf32> to vector<4x256xf32>
    %41 = arith.mulf %38, %40 : vector<4x256xf32>
    %c24 = arith.constant 24 : index
    %c0_24 = arith.constant 0 : index
    %42 = vector.load %arg6[%c24, %c0_24] : memref<36x256xf32, #tpu.memory_space<vmem>>, vector<4x256xf32>
    tpu.vector_store %arg6[%c24, %c0_24], %41 {strides = array<i32>} : memref<36x256xf32, #tpu.memory_space<vmem>>, vector<4x256xf32>,
    %c0_25 = arith.constant 0 : index
    %c0_26 = arith.constant 0 : index
    %c33 = arith.constant 33 : index
    %43 = vector.load %arg1[%c0_25, %c0_26, %c33] : memref<1x4x384xf32, #tpu.memory_space<vmem>>, vector<1x4x256xf32>
    %44 = vector.shape_cast %43 : vector<1x4x256xf32> to vector<4x256xf32>
    %45 = vector.extract_strided_slice %0 {offsets = [1, 0], sizes = [1, 256], strides = [1, 1]} : vector<3x256xf32> to vector<1x256xf32>
    %46 = vector.broadcast %45 : vector<1x256xf32> to vector<4x256xf32>
    %47 = arith.mulf %44, %46 : vector<4x256xf32>
    %c28 = arith.constant 28 : index
    %c0_27 = arith.constant 0 : index
    %48 = vector.load %arg6[%c28, %c0_27] : memref<36x256xf32, #tpu.memory_space<vmem>>, vector<4x256xf32>
    tpu.vector_store %arg6[%c28, %c0_27], %47 {strides = array<i32>} : memref<36x256xf32, #tpu.memory_space<vmem>>, vector<4x256xf32>,
    %c0_28 = arith.constant 0 : index
    %c0_29 = arith.constant 0 : index
    %c34 = arith.constant 34 : index
    %49 = vector.load %arg1[%c0_28, %c0_29, %c34] : memref<1x4x384xf32, #tpu.memory_space<vmem>>, vector<1x4x256xf32>
    %50 = vector.shape_cast %49 : vector<1x4x256xf32> to vector<4x256xf32>
    %51 = vector.extract_strided_slice %0 {offsets = [2, 0], sizes = [1, 256], strides = [1, 1]} : vector<3x256xf32> to vector<1x256xf32>
    %52 = vector.broadcast %51 : vector<1x256xf32> to vector<4x256xf32>
    %53 = arith.mulf %50, %52 : vector<4x256xf32>
    %c32_30 = arith.constant 32 : index
    %c0_31 = arith.constant 0 : index
    %54 = vector.load %arg6[%c32_30, %c0_31] : memref<36x256xf32, #tpu.memory_space<vmem>>, vector<4x256xf32>
    tpu.vector_store %arg6[%c32_30, %c0_31], %53 {strides = array<i32>} : memref<36x256xf32, #tpu.memory_space<vmem>>, vector<4x256xf32>,
    %c0_32 = arith.constant 0 : index
    %c0_33 = arith.constant 0 : index
    %55 = vector.load %arg2[%c0_32, %c0_33] : memref<8x36xf32, #tpu.memory_space<vmem>>, vector<8x36xf32>
    %c0_34 = arith.constant 0 : index
    %c0_35 = arith.constant 0 : index
    %56 = vector.load %arg6[%c0_34, %c0_35] : memref<36x256xf32, #tpu.memory_space<vmem>>, vector<36x256xf32>
    %cst = arith.constant dense<0.000000e+00> : vector<8x256xf32>
    %57 = tpu.matmul %55, %56, %cst {dimension_numbers = #tpu.dot_dimension_numbers<[1], [0], [0], [1], [0, 0, 1, 1], [], []>} : vector<8x36xf32>, vector<36x256xf32>, vector<8x256xf32> -> vector<8x256xf32>
    %c0_36 = arith.constant 0 : index
    %c0_37 = arith.constant 0 : index
    %58 = vector.load %arg3[%c0_36, %c0_37] : memref<8x1xf32, #tpu.memory_space<vmem>>, vector<8x1xf32>
    %59 = vector.broadcast %58 : vector<8x1xf32> to vector<8x256xf32>
    %60 = arith.addf %57, %59 : vector<8x256xf32>
    %cst_38 = arith.constant 0.000000e+00 : f32
    %61 = vector.broadcast %cst_38 : f32 to vector<8x256xf32>
    %62 = arith.maximumf %60, %61 : vector<8x256xf32>
    %c0_39 = arith.constant 0 : index
    %c0_40 = arith.constant 0 : index
    %c0_41 = arith.constant 0 : index
    %63 = vector.load %arg5[%c0_39, %c0_40, %c0_41] : memref<1x8x256xf32, #tpu.memory_space<vmem>>, vector<1x8x256xf32>
    %64 = vector.shape_cast %63 : vector<1x8x256xf32> to vector<8x256xf32>
    %65 = vector.shape_cast %62 : vector<8x256xf32> to vector<1x8x256xf32>
    tpu.vector_store %arg5[%c0_39, %c0_40, %c0_41], %65 {strides = array<i32>} : memref<1x8x256xf32, #tpu.memory_space<vmem>>, vector<1x8x256xf32>,
    return
  }
  func.func @transform_0(%arg0: i32) -> (i32, i32, i32) {
    %c0_i32 = arith.constant 0 : i32
    %c0_i32_0 = arith.constant 0 : i32
    %c0_i32_1 = arith.constant 0 : i32
    return %arg0, %c0_i32, %c0_i32_0 : i32, i32, i32
  }
  func.func @transform_1(%arg0: i32) -> (i32, i32) {
    %c0_i32 = arith.constant 0 : i32
    %c0_i32_0 = arith.constant 0 : i32
    %c0_i32_1 = arith.constant 0 : i32
    return %c0_i32, %c0_i32_0 : i32, i32
  }
  func.func @transform_2(%arg0: i32) -> (i32, i32) {
    %c0_i32 = arith.constant 0 : i32
    %c0_i32_0 = arith.constant 0 : i32
    %c0_i32_1 = arith.constant 0 : i32
    return %c0_i32, %c0_i32_0 : i32, i32
  }
  func.func @transform_3(%arg0: i32) -> (i32, i32) {
    %c0_i32 = arith.constant 0 : i32
    %c0_i32_0 = arith.constant 0 : i32
    %c0_i32_1 = arith.constant 0 : i32
    return %c0_i32, %c0_i32_0 : i32, i32
  }
  func.func @transform_4(%arg0: i32) -> (i32, i32, i32) {
    %c0_i32 = arith.constant 0 : i32
    %c0_i32_0 = arith.constant 0 : i32
    %c0_i32_1 = arith.constant 0 : i32
    return %arg0, %c0_i32, %c0_i32_0 : i32, i32, i32
  }
}

</mosaic_0001>

<llo_original>
// kernel: first_block_forward.1
$region0: #{first_block_forward.1}
  #allocation0 [shape = 'u32[]', space=smem, size = 0x4, offset = 0x4, fixed_abs, tag = 'smem constant byte address 0x4 - core index']
  #allocation1 [shape = 'u32[144,128]{1,0:T(1,128)}', space=vmem, size = 0x12000, scoped, tag = 'internal scratch']
  #allocation2 [shape = 'f32[36,256]{1,0:T(8,128)}', space=vmem, size = 0xa000, scoped, tag = 'scratch operand']
  %s0 = inlined_call_operand.vmem [shape: f32[2,4,384], index: 0, kind: input, shape index: {}]
  %s1 = inlined_call_operand.vmem [shape: f32[8,36], index: 1, kind: input, shape index: {}]
  %s2 = inlined_call_operand.vmem [shape: f32[8,1], index: 2, kind: input, shape index: {}]
  %s3 = inlined_call_operand.vmem [shape: f32[3,256], index: 3, kind: input, shape index: {}]
  %s4 = inlined_call_operand.vmem [shape: f32[2,8,256], index: 4, kind: output, shape index: {}]
  %s5 = sld [smem:[#allocation0]]
  $region49: #{first_block_forward.1} parent=0
    _
  %s7 = ssub.s32 1, %s5
  %s8 = scalar_select 0, %s7, %s5
  loop: start=0, step=1, limit=4
  $region2: #{first_block_forward.1} parent=0 // loop_pre_header
    _
  $region3: #{first_block_forward.1} parent=0 // loop_header
    %s10 = sphi 0, %s14
    %p11 = scmp.ge.s32.totalorder %s10, 4
    %s20 = sphi 0, %s22
    %s23 = sphi 0, %s20
    %s24 = sphi 0, %s23
    %s40 = sphi 0, %s24
    %s44 = sphi 0, %s44
    %s46 = sphi 0, %s44
    %s47 = sphi 0, %s46
    %s61 = sphi 0, %s47
    %s65 = sphi 0, %s65
    %s67 = sphi 0, %s65
    %s68 = sphi 0, %s67
    %s82 = sphi 0, %s68
    %s86 = sphi 0, %s86
    %s88 = sphi 0, %s86
    %s89 = sphi 0, %s88
    %s103 = sphi 0, %s89
    %s109 = sphi 0, %s111
    %s112 = sphi 0, %s109
    %s113 = sphi 0, %s112
    %s129 = sphi 0, %s113
  $region4: #{first_block_forward.1} parent=0 // loop_header_branch
    %13 = sbr.rel (%p11) target = $region8
  $region5: #{first_block_forward.1} parent=0 // loop_body
    %s15 = ssub.s32 %s10, 1
    %s16 = ssub.s32 %s10, 2
    %s17 = sadd.s32 %s10, 1
    %s18 = ssub.s32 %s10, %s17
    %p19 = scmp.eq.s32.totalorder %s18, 0
    %s21 = sadd.s32 %s20, 1
    %s22 = scalar_select %p19, %s20, %s21
    %p25 = pneg %p19
    %p26 = scmp.eq.s32.totalorder %s10, 1
    %p27 = por %p25, %p26
    %p28 = scmp.ne.s32.totalorder %s20, %s23
    %p29 = scmp.eq.s32.totalorder %s10, 0
    %p30 = por %p28, %p29
    %p31 = scmp.ne.s32.totalorder %s20, %s23
    %p32 = scmp.eq.s32.totalorder %s15, 1
    %p33 = por %p31, %p32
    %p34 = scmp.ne.s32.totalorder %s23, %s24
    %p35 = scmp.eq.s32.totalorder %s15, 0
    %p36 = por %p34, %p35
    %p37 = scmp.ne.s32.totalorder %s23, %s24
    %p38 = scmp.eq.s32.totalorder %s16, 1
    %p39 = por %p37, %p38
    %p41 = scmp.ne.s32.totalorder %s24, %s40
    %p42 = scmp.eq.s32.totalorder %s16, 0
    %p43 = por %p41, %p42
    %s45 = sadd.s32 %s44, 1
    %p48 = scmp.eq.s32.totalorder %s10, 1
    %p49 = scmp.ne.s32.totalorder %s44, %s46
    %p50 = scmp.eq.s32.totalorder %s10, 0
    %p51 = por %p49, %p50
    %p52 = scmp.ne.s32.totalorder %s44, %s46
    %p53 = scmp.eq.s32.totalorder %s15, 1
    %p54 = por %p52, %p53
    %p55 = scmp.ne.s32.totalorder %s46, %s47
    %p56 = scmp.eq.s32.totalorder %s15, 0
    %p57 = por %p55, %p56
    %p58 = scmp.ne.s32.totalorder %s46, %s47
    %p59 = scmp.eq.s32.totalorder %s16, 1
    %p60 = por %p58, %p59
    %p62 = scmp.ne.s32.totalorder %s47, %s61
    %p63 = scmp.eq.s32.totalorder %s16, 0
    %p64 = por %p62, %p63
    %s66 = sadd.s32 %s65, 1
    %p69 = scmp.eq.s32.totalorder %s10, 1
    %p70 = scmp.ne.s32.totalorder %s65, %s67
    %p71 = scmp.eq.s32.totalorder %s10, 0
    %p72 = por %p70, %p71
    %p73 = scmp.ne.s32.totalorder %s65, %s67
    %p74 = scmp.eq.s32.totalorder %s15, 1
    %p75 = por %p73, %p74
    %p76 = scmp.ne.s32.totalorder %s67, %s68
    %p77 = scmp.eq.s32.totalorder %s15, 0
    %p78 = por %p76, %p77
    %p79 = scmp.ne.s32.totalorder %s67, %s68
    %p80 = scmp.eq.s32.totalorder %s16, 1
    %p81 = por %p79, %p80
    %p83 = scmp.ne.s32.totalorder %s68, %s82
    %p84 = scmp.eq.s32.totalorder %s16, 0
    %p85 = por %p83, %p84
    %s87 = sadd.s32 %s86, 1
    %p90 = scmp.eq.s32.totalorder %s10, 1
    %p91 = scmp.ne.s32.totalorder %s86, %s88
    %p92 = scmp.eq.s32.totalorder %s10, 0
    %p93 = por %p91, %p92
    %p94 = scmp.ne.s32.totalorder %s86, %s88
    %p95 = scmp.eq.s32.totalorder %s15, 1
    %p96 = por %p94, %p95
    %p97 = scmp.ne.s32.totalorder %s88, %s89
    %p98 = scmp.eq.s32.totalorder %s15, 0
    %p99 = por %p97, %p98
    %p100 = scmp.ne.s32.totalorder %s88, %s89
    %p101 = scmp.eq.s32.totalorder %s16, 1
    %p102 = por %p100, %p101
    %p104 = scmp.ne.s32.totalorder %s89, %s103
    %p105 = scmp.eq.s32.totalorder %s16, 0
    %p106 = por %p104, %p105
    %s107 = ssub.s32 %s10, %s17
    %p108 = scmp.eq.s32.totalorder %s107, 0
    %s110 = sadd.s32 %s109, 1
    %s111 = scalar_select %p108, %s109, %s110
    %p114 = pneg %p108
    %p115 = scmp.eq.s32.totalorder %s10, 1
    %p116 = por %p114, %p115
    %p117 = scmp.ne.s32.totalorder %s109, %s112
    %p118 = scmp.eq.s32.totalorder %s10, 0
    %p119 = por %p117, %p118
    %p120 = scmp.ne.s32.totalorder %s109, %s112
    %p121 = scmp.eq.s32.totalorder %s15, 1
    %p122 = por %p120, %p121
    %p123 = scmp.ne.s32.totalorder %s112, %s113
    %p124 = scmp.eq.s32.totalorder %s15, 0
    %p125 = por %p123, %p124
    %p126 = scmp.ne.s32.totalorder %s112, %s113
    %p127 = scmp.eq.s32.totalorder %s16, 1
    %p128 = por %p126, %p127
    %p130 = scmp.ne.s32.totalorder %s113, %s129
    %p131 = scmp.eq.s32.totalorder %s16, 0
    %p132 = por %p130, %p131
    %p133 = scmp.le.s32.totalorder 1, %s10
    %p134 = scmp.lt.s32.totalorder %s10, 3
    %p135 = pnand %p133, %p134
    %p136 = pneg %p135
    // Predicated region
    $region9: #{first_block_forward.1} parent=5 // pred_check
      _
    $region10: #{first_block_forward.1} parent=5 // pred_check_branch
      %138 = sbr.rel (%p135) target = $region12
    $region11: #{first_block_forward.1} parent=5 // pred_region
      %s139 = ssub.s32 %s10, 1
      // Predicated region
      $region13: #{first_block_forward.1} parent=11 // pred_check
        %p140 = pneg %p57
      $region14: #{first_block_forward.1} parent=11 // pred_check_branch
        %142 = sbr.rel (%p140) target = $region16
      $region15: #{first_block_forward.1} parent=11 // pred_region
        _
      $region16: #{first_block_forward.1} parent=11 // pred_fallthru
        _
      // Predicated region
      $region17: #{first_block_forward.1} parent=11 // pred_check
        %p143 = pneg %p78
      $region18: #{first_block_forward.1} parent=11 // pred_check_branch
        %145 = sbr.rel (%p143) target = $region20
      $region19: #{first_block_forward.1} parent=11 // pred_region
        _
      $region20: #{first_block_forward.1} parent=11 // pred_fallthru
        _
      // Predicated region
      $region21: #{first_block_forward.1} parent=11 // pred_check
        %p146 = pneg %p99
      $region22: #{first_block_forward.1} parent=11 // pred_check_branch
        %148 = sbr.rel (%p146) target = $region24
      $region23: #{first_block_forward.1} parent=11 // pred_region
        _
      $region24: #{first_block_forward.1} parent=11 // pred_fallthru
        _
    $region12: #{first_block_forward.1} parent=5 // pred_fallthru
      _
    %p149 = scmp.lt.s32.totalorder %s10, 2
    // Predicated region
    $region25: #{first_block_forward.1} parent=5 // pred_check
      %p150 = pneg %p149
    $region26: #{first_block_forward.1} parent=5 // pred_check_branch
      %152 = sbr.rel (%p150) target = $region28
    $region27: #{first_block_forward.1} parent=5 // pred_region
      // Predicated region
      $region29: #{first_block_forward.1} parent=27 // pred_check
        %p153 = pneg %p30
      $region30: #{first_block_forward.1} parent=27 // pred_check_branch
        %155 = sbr.rel (%p153) target = $region32
      $region31: #{first_block_forward.1} parent=27 // pred_region
        %p156 = scmp.lt.s32.totalorder %s10, 1
        %s157 = scalar_select %p156, %s10, 1
        %s158 = smul.addr %s157, 3
        %s159 = smul.addr %s158, 4
        %s160 = scalar_lea.vmem %s0, %s159
      $region32: #{first_block_forward.1} parent=27 // pred_fallthru
        _
    $region28: #{first_block_forward.1} parent=5 // pred_fallthru
      _
    %p161 = scmp.le.s32.totalorder 1, %s10
    %p162 = scmp.lt.s32.totalorder %s10, 3
    %p163 = pnand %p161, %p162
    %p164 = pneg %p163
    // Predicated region
    $region33: #{first_block_forward.1} parent=5 // pred_check
      _
    $region34: #{first_block_forward.1} parent=5 // pred_check_branch
      %166 = sbr.rel (%p163) target = $region36
    $region35: #{first_block_forward.1} parent=5 // pred_region
      %s167 = ssub.s32 %s10, 1
      %p168 = scmp.lt.s32.totalorder %s15, 1
      %s169 = scalar_select %p168, %s15, 1
      %s170 = smul.addr %s169, 3
      %s171 = smul.addr %s170, 4
      %s172 = scalar_lea.vmem %s0, %s171
      %p173 = pneg %p36
      %p174 = pneg %p33
      %p175 = pneg %p57
      %p176 = pneg %p54
      %p177 = pneg %p78
      %p178 = pneg %p75
      %p179 = pneg %p99
      %p180 = pneg %p96
      %p181 = pneg %p125
      %p182 = pneg %p122
      %p183 = scmp.lt.s32.totalorder %s15, 1
      %s184 = scalar_select %p183, %s15, 1
      %s185 = smul.addr %s184, 2
      %s186 = smul.addr %s185, 8
      %s187 = scalar_lea.vmem %s4, %s186
      %p188 = scmp.lt.s32.totalorder %s15, 1
      %s189 = scalar_select %p188, %s15, 1
      %s190 = smul.addr %s189, 3
      %s191 = smul.addr %s190, 4
      %s192 = scalar_lea.vmem %s0, %s191
      %p193 = scmp.lt.s32.totalorder %s15, 1
      %s194 = scalar_select %p193, %s15, 1
      %s195 = smul.addr %s194, 2
      %s196 = smul.addr %s195, 8
      %s197 = scalar_lea.vmem %s4, %s196
      %v198 = vld [vmem:[%s3] sm:$0x77]
      %v199 = vld [vmem:[%s192] sm:$0xff]
      %v201 = vlaneseq
      %v202 = vshrl.u32 %v201, 7
      %v203 = vsub.s32 0, %v202
      %v204 = vrot.slane %v198, %v203
      %v205 = vlaneseq
      %v206 = vshrl.u32 %v205, 7
      %v207 = vsub.s32 4, %v206
      %v208 = vrot.slane %v198, %v207
      %v211 = vlaneseq
      %v212 = vshrl.u32 %v211, 7
      %v213 = vsub.s32 0, %v212
      %v214 = vrot.slane %v204, %v213
      %v215 = vlaneseq
      %v216 = vshrl.u32 %v215, 7
      %v217 = vsub.s32 0, %v216
      %v218 = vrot.slane %v208, %v217
      %v221 = vcombine.low %v214, %v218
      %v223 = vmul.f32 %v199, %v221
      %v225 = vcombine.high %v223, %v223
      %227 = vst [vmem:[#allocation2] sm:$0xf] %v223
      %228 = vst [vmem:[#allocation2 + $0x8] sm:$0xf] %v225
      %v229 = vld [vmem:[%s192] sm:$0xff]
      %v230 = vld [vmem:[%s192 + $0x8] sm:$0xf]
      %v231 = vlaneseq
      %v232 = vshrl.u32 %v231, 7
      %v233 = vsub.s32 1, %v232
      %v234 = vrot.slane %v198, %v233
      %v235 = vlaneseq
      %v236 = vshrl.u32 %v235, 7
      %v237 = vsub.s32 5, %v236
      %v238 = vrot.slane %v198, %v237
      %v241 = vlaneseq
      %v242 = vshrl.u32 %v241, 7
      %v243 = vsub.s32 1, %v242
      %v244 = vrot.slane %v234, %v243
      %v245 = vlaneseq
      %v246 = vshrl.u32 %v245, 7
      %v247 = vsub.s32 1, %v246
      %v248 = vrot.slane %v238, %v247
      %v251 = vcombine.low %v244, %v248
      %252 = vrot.lane.b32.xlu0 %v251, 1
      %v253 = vpop.permute.xlu0 %252
      %v254 = vrot.slane %v253, 4
      %vm255 = vcmask 7168
      %v256 = vsel %vm255, %v254, %v253
      %v259 = vmul.f32 %v229, %v256
      %v260 = vmul.f32 %v230, %v254
      %v263 = vcombine.low %v259, %v259
      %v264 = vcombine.low %v260, %v260
      %265 = vrot.lane.b32.xlu0 %v263, 127
      %v266 = vpop.permute.xlu0 %265
      %267 = vrot.lane.b32.xlu0 %v259, 127
      %v268 = vpop.permute.xlu0 %267
      %269 = vrot.lane.b32.xlu0 %v264, 127
      %v270 = vpop.permute.xlu0 %269
      %vm271 = vcmask 1039360
      %v272 = vsel %vm271, %v266, %v268
      %v273 = vsel %vm271, %v268, %v270
      %276 = vst [vmem:[#allocation2] sm:$0xf0] %v272
      %277 = vst [vmem:[#allocation2 + $0x8] sm:$0xf0] %v273
      %v278 = vld [vmem:[%s192] sm:$0xff]
      %v279 = vld [vmem:[%s192 + $0x8] sm:$0xf]
      %v280 = vlaneseq
      %v281 = vshrl.u32 %v280, 7
      %v282 = vsub.s32 2, %v281
      %v283 = vrot.slane %v198, %v282
      %v284 = vlaneseq
      %v285 = vshrl.u32 %v284, 7
      %v286 = vsub.s32 6, %v285
      %v287 = vrot.slane %v198, %v286
      %v290 = vlaneseq
      %v291 = vshrl.u32 %v290, 7
      %v292 = vsub.s32 2, %v291
      %v293 = vrot.slane %v283, %v292
      %v294 = vlaneseq
      %v295 = vshrl.u32 %v294, 7
      %v296 = vsub.s32 2, %v295
      %v297 = vrot.slane %v287, %v296
      %v300 = vcombine.low %v293, %v297
      %301 = vrot.lane.b32.xlu0 %v300, 2
      %v302 = vpop.permute.xlu0 %301
      %v303 = vrot.slane %v302, 4
      %vm304 = vcmask 15360
      %v305 = vsel %vm304, %v303, %v302
      %v308 = vmul.f32 %v278, %v305
      %v309 = vmul.f32 %v279, %v303
      %v312 = vcombine.high %v308, %v308
      %313 = vrot.lane.b32.xlu0 %v308, 126
      %v314 = vpop.permute.xlu0 %313
      %315 = vrot.lane.b32.xlu0 %v312, 126
      %v316 = vpop.permute.xlu0 %315
      %317 = vrot.lane.b32.xlu0 %v309, 126
      %v318 = vpop.permute.xlu0 %317
      %vm319 = vcmask 1031168
      %v320 = vsel %vm319, %v314, %v316
      %v321 = vsel %vm319, %v316, %v318
      %324 = vst [vmem:[#allocation2 + $0x10] sm:$0xf] %v320
      %325 = vst [vmem:[#allocation2 + $0x18] sm:$0xf] %v321
      %v326 = vld [vmem:[%s192] sm:$0xff]
      %v327 = vld [vmem:[%s192 + $0x8] sm:$0xf]
      %328 = vrot.lane.b32.xlu0 %v221, 16
      %v329 = vpop.permute.xlu0 %328
      %v330 = vrot.slane %v329, 4
      %vm331 = vcmask 130048
      %v332 = vsel %vm331, %v330, %v329
      %v335 = vmul.f32 %v326, %v332
      %v336 = vmul.f32 %v327, %v330
      %v339 = vcombine.low %v335, %v335
      %v340 = vcombine.low %v336, %v336
      %341 = vrot.lane.b32.xlu0 %v339, 112
      %v342 = vpop.permute.xlu0 %341
      %343 = vrot.lane.b32.xlu0 %v335, 112
      %v344 = vpop.permute.xlu0 %343
      %345 = vrot.lane.b32.xlu0 %v340, 112
      %v346 = vpop.permute.xlu0 %345
      %vm347 = vcmask 916480
      %v348 = vsel %vm347, %v342, %v344
      %v349 = vsel %vm347, %v344, %v346
      %352 = vst [vmem:[#allocation2 + $0x10] sm:$0xf0] %v348
      %353 = vst [vmem:[#allocation2 + $0x18] sm:$0xf0] %v349
      %v354 = vld [vmem:[%s192] sm:$0xff]
      %v355 = vld [vmem:[%s192 + $0x8] sm:$0xf]
      %356 = vrot.lane.b32.xlu0 %v251, 17
      %v357 = vpop.permute.xlu0 %356
      %v358 = vrot.slane %v357, 4
      %vm359 = vcmask 138240
      %v360 = vsel %vm359, %v358, %v357
      %v363 = vmul.f32 %v354, %v360
      %v364 = vmul.f32 %v355, %v358
      %v367 = vcombine.high %v363, %v363
      %368 = vrot.lane.b32.xlu0 %v363, 111
      %v369 = vpop.permute.xlu0 %368
      %370 = vrot.lane.b32.xlu0 %v367, 111
      %v371 = vpop.permute.xlu0 %370
      %372 = vrot.lane.b32.xlu0 %v364, 111
      %v373 = vpop.permute.xlu0 %372
      %vm374 = vcmask 908288
      %v375 = vsel %vm374, %v369, %v371
      %v376 = vsel %vm374, %v371, %v373
      %379 = vst [vmem:[#allocation2 + $0x20] sm:$0xf] %v375
      %380 = vst [vmem:[#allocation2 + $0x28] sm:$0xf] %v376
      %v381 = vld [vmem:[%s192] sm:$0xff]
      %v382 = vld [vmem:[%s192 + $0x8] sm:$0xf]
      %383 = vrot.lane.b32.xlu0 %v300, 18
      %v384 = vpop.permute.xlu0 %383
      %v385 = vrot.slane %v384, 4
      %vm386 = vcmask 146432
      %v387 = vsel %vm386, %v385, %v384
      %v390 = vmul.f32 %v381, %v387
      %v391 = vmul.f32 %v382, %v385
      %v394 = vcombine.low %v390, %v390
      %v395 = vcombine.low %v391, %v391
      %396 = vrot.lane.b32.xlu0 %v394, 110
      %v397 = vpop.permute.xlu0 %396
      %398 = vrot.lane.b32.xlu0 %v390, 110
      %v399 = vpop.permute.xlu0 %398
      %400 = vrot.lane.b32.xlu0 %v395, 110
      %v401 = vpop.permute.xlu0 %400
      %vm402 = vcmask 900096
      %v403 = vsel %vm402, %v397, %v399
      %v404 = vsel %vm402, %v399, %v401
      %407 = vst [vmem:[#allocation2 + $0x20] sm:$0xf0] %v403
      %408 = vst [vmem:[#allocation2 + $0x28] sm:$0xf0] %v404
      %v409 = vld [vmem:[%s192] sm:$0xff]
      %v410 = vld [vmem:[%s192 + $0x8] sm:$0xf]
      %411 = vrot.lane.b32.xlu0 %v221, 32
      %v412 = vpop.permute.xlu0 %411
      %v413 = vrot.slane %v412, 4
      %vm414 = vcmask 261120
      %v415 = vsel %vm414, %v413, %v412
      %v418 = vmul.f32 %v409, %v415
      %v419 = vmul.f32 %v410, %v413
      %v422 = vcombine.high %v418, %v418
      %423 = vrot.lane.b32.xlu0 %v418, 96
      %v424 = vpop.permute.xlu0 %423
      %425 = vrot.lane.b32.xlu0 %v422, 96
      %v426 = vpop.permute.xlu0 %425
      %427 = vrot.lane.b32.xlu0 %v419, 96
      %v428 = vpop.permute.xlu0 %427
      %vm429 = vcmask 785408
      %v430 = vsel %vm429, %v424, %v426
      %v431 = vsel %vm429, %v426, %v428
      %434 = vst [vmem:[#allocation2 + $0x30] sm:$0xf] %v430
      %435 = vst [vmem:[#allocation2 + $0x38] sm:$0xf] %v431
      %v436 = vld [vmem:[%s192] sm:$0xff]
      %v437 = vld [vmem:[%s192 + $0x8] sm:$0xf]
      %438 = vrot.lane.b32.xlu0 %v251, 33
      %v439 = vpop.permute.xlu0 %438
      %v440 = vrot.slane %v439, 4
      %vm441 = vcmask 269312
      %v442 = vsel %vm441, %v440, %v439
      %v445 = vmul.f32 %v436, %v442
      %v446 = vmul.f32 %v437, %v440
      %v449 = vcombine.low %v445, %v445
      %v450 = vcombine.low %v446, %v446
      %451 = vrot.lane.b32.xlu0 %v449, 95
      %v452 = vpop.permute.xlu0 %451
      %453 = vrot.lane.b32.xlu0 %v445, 95
      %v454 = vpop.permute.xlu0 %453
      %455 = vrot.lane.b32.xlu0 %v450, 95
      %v456 = vpop.permute.xlu0 %455
      %vm457 = vcmask 777216
      %v458 = vsel %vm457, %v452, %v454
      %v459 = vsel %vm457, %v454, %v456
      %462 = vst [vmem:[#allocation2 + $0x30] sm:$0xf0] %v458
      %463 = vst [vmem:[#allocation2 + $0x38] sm:$0xf0] %v459
      %v464 = vld [vmem:[%s192] sm:$0xff]
      %v465 = vld [vmem:[%s192 + $0x8] sm:$0xf]
      %466 = vrot.lane.b32.xlu0 %v300, 34
      %v467 = vpop.permute.xlu0 %466
      %v468 = vrot.slane %v467, 4
      %vm469 = vcmask 277504
      %v470 = vsel %vm469, %v468, %v467
      %v473 = vmul.f32 %v464, %v470
      %v474 = vmul.f32 %v465, %v468
      %v477 = vcombine.high %v473, %v473
      %478 = vrot.lane.b32.xlu0 %v473, 94
      %v479 = vpop.permute.xlu0 %478
      %480 = vrot.lane.b32.xlu0 %v477, 94
      %v481 = vpop.permute.xlu0 %480
      %482 = vrot.lane.b32.xlu0 %v474, 94
      %v483 = vpop.permute.xlu0 %482
      %vm484 = vcmask 769024
      %v485 = vsel %vm484, %v479, %v481
      %v486 = vsel %vm484, %v481, %v483
      %489 = vst [vmem:[#allocation2 + $0x40] sm:$0xf] %v485
      %490 = vst [vmem:[#allocation2 + $0x48] sm:$0xf] %v486
      %v491 = vld [vmem:[%s1] sm:$0xff]
      %v492 = vld [vmem:[#allocation2] sm:$0xff]
      %v493 = vld [vmem:[#allocation2 + $0x8] sm:$0xff]
      %v494 = vld [vmem:[#allocation2 + $0x10] sm:$0xff]
      %v495 = vld [vmem:[#allocation2 + $0x18] sm:$0xff]
      %v496 = vld [vmem:[#allocation2 + $0x20] sm:$0xff]
      %v497 = vld [vmem:[#allocation2 + $0x28] sm:$0xff]
      %v498 = vld [vmem:[#allocation2 + $0x30] sm:$0xff]
      %v499 = vld [vmem:[#allocation2 + $0x38] sm:$0xff]
      %v500 = vld [vmem:[#allocation2 + $0x40] sm:$0xf]
      %v501 = vld [vmem:[#allocation2 + $0x48] sm:$0xf]
      %v502 = vld [vmem:[%s2] sm:$0xff]
      %504 = vset.pattern.permute.xlu0 0
      %505 = vperm.xlu0 %504, %v502
      %v506 = vpop.permute.xlu0 %505
      %vm508 = vcmask 293888
      %v510 = vsel %vm508, %v491, 0
      %vm512 = vcmask 1043456
      %v514 = vsel %vm512, %v500, 0
      %v517 = vsel %vm512, %v501, 0
      %519 = vmatprep.subr.mxu0 0.0
      %520 = vmatpush1.msra.mxu0 0.0
      %521 = vmatprep.subr.mxu0 0.0
      %522 = vmatpush1.msra.mxu0 0.0
      %523 = vmatprep.subr.mxu0 0.0
      %524 = vmatpush1.msra.mxu0 0.0
      %525 = vmatprep.subr.mxu0 0.0
      %526 = vmatpush1.msra.mxu0 0.0
      %527 = vmatprep.subr.mxu0 0.0
      %528 = vmatpush1.msra.mxu0 0.0
      %529 = vmatprep.subr.mxu0 0.0
      %530 = vmatpush1.msra.mxu0 0.0
      %531 = vmatprep.subr.mxu0 0.0
      %532 = vmatpush1.msra.mxu0 0.0
      %533 = vmatprep.subr.mxu0 0.0
      %534 = vmatpush1.msra.mxu0 0.0
      %535 = vmatprep.subr.mxu0 0.0
      %536 = vmatpush1.msra.mxu0 0.0
      %537 = vmatprep.subr.mxu0 0.0
      %538 = vmatpush1.msra.mxu0 0.0
      %539 = vmatprep.subr.mxu0 0.0
      %540 = vmatpush1.msra.mxu0 0.0
      %541 = vmatprep.subr.mxu0 %v517
      %542 = vmatpush1.msra.mxu0 %v514
      %543 = vmatprep.subr.mxu0 %v499
      %544 = vmatpush1.msra.mxu0 %v498
      %545 = vmatprep.subr.mxu0 %v497
      %546 = vmatpush1.msra.mxu0 %v496
      %547 = vmatprep.subr.mxu0 %v495
      %548 = vmatpush1.msra.mxu0 %v494
      %549 = vmatprep.subr.mxu0 %v493
      %550 = vmatpush1.msra.mxu0 %v492
      %551 = vmatprep.subr.mxu0 0.0
      %552 = vmatpush2.msra.mxu0 0.0
      %553 = vmatprep.subr.mxu0 0.0
      %554 = vmatpush2.msra.mxu0 0.0
      %555 = vmatprep.subr.mxu0 0.0
      %556 = vmatpush2.msra.mxu0 0.0
      %557 = vmatprep.subr.mxu0 0.0
      %558 = vmatpush2.msra.mxu0 0.0
      %559 = vmatprep.subr.mxu0 0.0
      %560 = vmatpush2.msra.mxu0 0.0
      %561 = vmatprep.subr.mxu0 0.0
      %562 = vmatpush2.msra.mxu0 0.0
      %563 = vmatprep.subr.mxu0 0.0
      %564 = vmatpush2.msra.mxu0 0.0
      %565 = vmatprep.subr.mxu0 0.0
      %566 = vmatpush2.msra.mxu0 0.0
      %567 = vmatprep.subr.mxu0 0.0
      %568 = vmatpush2.msra.mxu0 0.0
      %569 = vmatprep.subr.mxu0 0.0
      %570 = vmatpush2.msra.mxu0 0.0
      %571 = vmatprep.subr.mxu0 0.0
      %572 = vmatpush2.msra.mxu0 0.0
      %573 = vmatprep.subr.mxu0 0.0
      %574 = vmatpush2.msra.mxu0 0.0
      %575 = vmatprep.subr.mxu0 0.0
      %576 = vmatpush2.msra.mxu0 0.0
      %577 = vmatprep.subr.mxu0 0.0
      %578 = vmatpush2.msra.mxu0 0.0
      %579 = vmatprep.subr.mxu0 0.0
      %580 = vmatpush2.msra.mxu0 0.0
      %581 = vmatprep.subr.mxu0 0.0
      %582 = vmatpush2.msra.mxu0 0.0
      %583 = vmatprep.mubr.f32.mxu0 0.0
      %584 = vmatmul.mubr.f32.gmra.mxu0 %v510
      %v585 = vpop.f32.mrf.mxu0
      %v586 = vadd.f32 %v506, %v585
      %v587 = vpop.f32.mrf.mxu0
      %v588 = vadd.f32 %v506, %v587
      %589 = vdwg.mxu0
      %v590 = vmax.f32 %v586, 0.0
      %v591 = vmax.f32 %v588, 0.0
      %592 = vst [vmem:[%s197] sm:$0xff] %v590
      %593 = vst [vmem:[%s197 + $0x8] sm:$0xff] %v591
      %p594 = scmp.lt.s32.totalorder %s15, 1
      %s595 = scalar_select %p594, %s15, 1
      %s596 = smul.addr %s595, 2
      %s597 = smul.addr %s596, 8
      %s598 = scalar_lea.vmem %s4, %s597
      // Predicated region
      $region37: #{first_block_forward.1} parent=35 // pred_check
        %p599 = pneg %p122
      $region38: #{first_block_forward.1} parent=35 // pred_check_branch
        %601 = sbr.rel (%p599) target = $region40
      $region39: #{first_block_forward.1} parent=35 // pred_region
        _
      $region40: #{first_block_forward.1} parent=35 // pred_fallthru
        _
    $region36: #{first_block_forward.1} parent=5 // pred_fallthru
      _
    %p602 = scmp.le.s32.totalorder 2, %s10
    // Predicated region
    $region41: #{first_block_forward.1} parent=5 // pred_check
      %p603 = pneg %p602
    $region42: #{first_block_forward.1} parent=5 // pred_check_branch
      %605 = sbr.rel (%p603) target = $region44
    $region43: #{first_block_forward.1} parent=5 // pred_region
      %s606 = ssub.s32 %s10, 2
      // Predicated region
      $region45: #{first_block_forward.1} parent=43 // pred_check
        %p607 = pneg %p128
      $region46: #{first_block_forward.1} parent=43 // pred_check_branch
        %609 = sbr.rel (%p607) target = $region48
      $region47: #{first_block_forward.1} parent=43 // pred_region
        %p610 = scmp.lt.s32.totalorder %s16, 1
        %s611 = scalar_select %p610, %s16, 1
        %s612 = smul.addr %s611, 2
        %s613 = smul.addr %s612, 8
        %s614 = scalar_lea.vmem %s4, %s613
      $region48: #{first_block_forward.1} parent=43 // pred_fallthru
        _
    $region44: #{first_block_forward.1} parent=5 // pred_fallthru
      _
  $region6: #{first_block_forward.1} parent=0 // loop_footer
    %s14 = sadd.s32 1, %s10
  $region7: #{first_block_forward.1} parent=0 // loop_footer_branch
    %9 = sbr.rel target = $region3
  $region8: #{first_block_forward.1} parent=0 // loop_exit
    _

</llo_original>
